<compile_context>
chip_gen: v6e
topology: v6e:2x2x1
jax: 0.10.0
libtpu: 0.0.40
codegen_flags: <defaults>
</compile_context>

<pallas_src>
import functools

import jax
import jax.numpy as jnp
from jax.experimental import pallas as pl
from jax.experimental.pallas import tpu as pltpu


_COMPUTE_DTYPE = jnp.bfloat16          # matmul datapath dtype (acc stays f32)
_WEIGHT_RESIDENT_BUDGET = 8 << 20      # max resident-weight bytes in VMEM
_VMEM_LIMIT_CAP = 48 << 20             # headroom under v7x's 64 MiB VMEM
_VMEM_LIMIT_FLOOR = 16 << 20


def _pick_row_tile(M, preferred=512, align=16):
    """Row tile: multiple of `align` dividing M, as large as possible but
    <= preferred; keeps >=2 grid steps when M allows (v7x megacore sharding).
    Falls back to the full extent (always a legal block)."""
    if M <= preferred:
        if M % (2 * align) == 0:
            return M // 2            # two row tiles -> both TCs busy on v7x
        return M
    t = (preferred // align) * align
    while t >= align:
        if M % t == 0:
            return t
        t -= align
    return M


def _pick_k_tile(K, preferred=512, align=128):
    """Lane-aligned reduction tile dividing K (streamed-weight path only)."""
    if K <= preferred:
        return K
    t = (preferred // align) * align
    while t >= align:
        if K % t == 0:
            return t
        t -= align
    return K


def _layer_norm_rows(z, g, beta, eps, out_dtype):
    """Fused LayerNorm over the last dim of a f32 (rows, D) tile."""
    inv_d = 1.0 / z.shape[-1]
    s1 = jnp.sum(z, axis=-1, keepdims=True)           # XLU reductions issued
    s2 = jnp.sum(z * z, axis=-1, keepdims=True)       # together (no mean dep)
    mean = s1 * inv_d
    var = jnp.maximum(s2 * inv_d - mean * mean, 0.0)   # biased var (torch)
    inv = jax.lax.rsqrt(var + eps)                     # EUP slot
    return ((z - mean) * inv * g + beta).astype(out_dtype)


def _fused_kernel_resident(eps, x_ref, w_ref, b_ref, res_ref, g_ref, beta_ref,
                           out_ref):
    """Single grid axis over row tiles; the whole (I, D) weight is resident."""
    y = jnp.dot(x_ref[...], w_ref[...], preferred_element_type=jnp.float32)
    # dense + bias, dropout (identity in eval), residual add — all f32.
    z = y + b_ref[...].astype(jnp.float32) + res_ref[...].astype(jnp.float32)
    out_ref[...] = _layer_norm_rows(z, g_ref[...].astype(jnp.float32),
                                    beta_ref[...].astype(jnp.float32),
                                    eps, out_ref.dtype)


def _fused_kernel_streamed(eps, x_ref, w_ref, b_ref, res_ref, g_ref, beta_ref,
                           out_ref, acc_ref):
    """(row-tile, k-tile) grid; weight streamed along K, f32 accumulator."""
    k = pl.program_id(1)
    part = jnp.dot(x_ref[...], w_ref[...], preferred_element_type=jnp.float32)

    @pl.when(k == 0)
    def _():
        acc_ref[...] = part          # direct write: no zero-then-accumulate

    @pl.when(k > 0)
    def _():
        acc_ref[...] += part

    @pl.when(k == pl.num_programs(1) - 1)
    def _():
        z = (acc_ref[...] + b_ref[...].astype(jnp.float32)
             + res_ref[...].astype(jnp.float32))
        out_ref[...] = _layer_norm_rows(z, g_ref[...].astype(jnp.float32),
                                        beta_ref[...].astype(jnp.float32),
                                        eps, out_ref.dtype)


def prepare_params(params, compute_dtype=_COMPUTE_DTYPE):
    """One-time (parameter-load-time) preparation.

    Transposes the nn.Linear weight from (out, in) = (D, I) to (I, D) and casts
    it to the matmul compute dtype, so nothing in the per-forward path performs
    an HBM-copying transpose and the kernel's weight DMA is unit-stride."""
    return {
        "w_t": jnp.asarray(params["w"]).T.astype(compute_dtype),  # (I, D)
        "b": jnp.asarray(params["b"]).astype(jnp.float32),
        "gamma": jnp.asarray(params["gamma"]).astype(jnp.float32),
        "beta": jnp.asarray(params["beta"]).astype(jnp.float32),
    }


def husky_qformer_output(hidden_states, input_tensor, prepared, eps=1e-12,
                         *, tm=None, tk=None, weight_resident=None):
    """hidden_states: [B, S, I], input_tensor: [B, S, D] -> [B, S, D].

    `prepared` must come from prepare_params(). `weight_resident=None` chooses
    automatically based on the weight's VMEM footprint."""
    B, S, I = hidden_states.shape
    D = input_tensor.shape[-1]
    M = B * S

    w_t = prepared["w_t"]                       # (I, D), compute dtype
    compute_dtype = w_t.dtype
    out_dtype = hidden_states.dtype

    x = hidden_states.reshape(M, I).astype(compute_dtype)
    res = input_tensor.reshape(M, D)
    b = prepared["b"].reshape(1, D)
    g = prepared["gamma"].reshape(1, D)
    beta = prepared["beta"].reshape(1, D)

    in_bytes = jnp.dtype(compute_dtype).itemsize
    res_bytes = jnp.dtype(res.dtype).itemsize
    out_bytes = jnp.dtype(out_dtype).itemsize
    weight_bytes = I * D * in_bytes

    if weight_resident is None:
        weight_resident = weight_bytes <= _WEIGHT_RESIDENT_BUDGET

    tm = tm or _pick_row_tile(M, preferred=512, align=16)

    if weight_resident:
        # ------- resident-weight path: grid over row tiles only -------
        grid = (M // tm,)
        vmem_est = (2 * tm * I * in_bytes            # x (double-buffered)
                    + 2 * weight_bytes               # W (constant block)
                    + 2 * tm * D * (res_bytes + out_bytes)
                    + tm * D * 4                     # f32 z temporary
                    + 6 * D * 4)                     # bias/gamma/beta
        vmem_limit = int(min(_VMEM_LIMIT_CAP,
                             max(_VMEM_LIMIT_FLOOR, 2 * vmem_est)))
        cost = pl.CostEstimate(
            flops=2 * M * I * D + 10 * M * D,
            transcendentals=M,
            bytes_accessed=(M * I * in_bytes + weight_bytes
                            + M * D * (res_bytes + out_bytes) + 3 * D * 4),
        )
        out = pl.pallas_call(
            functools.partial(_fused_kernel_resident, eps),
            out_shape=jax.ShapeDtypeStruct((M, D), out_dtype),
            grid_spec=pltpu.PrefetchScalarGridSpec(
                num_scalar_prefetch=0,
                grid=grid,
                in_specs=[
                    pl.BlockSpec((tm, I), lambda i: (i, 0)),   # x (streamed)
                    pl.BlockSpec((I, D), lambda i: (0, 0)),    # W (resident)
                    pl.BlockSpec((1, D), lambda i: (0, 0)),    # bias
                    pl.BlockSpec((tm, D), lambda i: (i, 0)),   # residual
                    pl.BlockSpec((1, D), lambda i: (0, 0)),    # gamma
                    pl.BlockSpec((1, D), lambda i: (0, 0)),    # beta
                ],
                out_specs=pl.BlockSpec((tm, D), lambda i: (i, 0)),
            ),
            compiler_params=pltpu.CompilerParams(
                dimension_semantics=("parallel",),
                vmem_limit_bytes=vmem_limit),
            cost_estimate=cost,
        )(x, w_t, b, res, g, beta)
    else:
        # ------- K-streamed fallback for weights too large for VMEM -------
        tk = tk or _pick_k_tile(I, preferred=512, align=128)
        grid = (M // tm, I // tk)
        vmem_est = (2 * tm * tk * in_bytes
                    + 2 * tk * D * in_bytes
                    + 2 * tm * D * (res_bytes + out_bytes)
                    + tm * D * 4                     # f32 accumulator
                    + 6 * D * 4)
        vmem_limit = int(min(_VMEM_LIMIT_CAP,
                             max(_VMEM_LIMIT_FLOOR, 2 * vmem_est)))
        cost = pl.CostEstimate(
            flops=2 * M * I * D + 10 * M * D,
            transcendentals=M,
            bytes_accessed=(M * I * in_bytes
                            + (M // tm) * weight_bytes   # W re-streamed per row tile
                            + M * D * (res_bytes + out_bytes) + 3 * D * 4),
        )
        out = pl.pallas_call(
            functools.partial(_fused_kernel_streamed, eps),
            out_shape=jax.ShapeDtypeStruct((M, D), out_dtype),
            grid_spec=pltpu.PrefetchScalarGridSpec(
                num_scalar_prefetch=0,
                grid=grid,
                in_specs=[
                    pl.BlockSpec((tm, tk), lambda i, k: (i, k)),   # x
                    pl.BlockSpec((tk, D), lambda i, k: (k, 0)),    # W^T slab
                    pl.BlockSpec((1, D), lambda i, k: (0, 0)),     # bias
                    pl.BlockSpec((tm, D), lambda i, k: (i, 0)),    # residual
                    pl.BlockSpec((1, D), lambda i, k: (0, 0)),     # gamma
                    pl.BlockSpec((1, D), lambda i, k: (0, 0)),     # beta
                ],
                out_specs=pl.BlockSpec((tm, D), lambda i, k: (i, 0)),
                scratch_shapes=[pltpu.VMEM((tm, D), jnp.float32)],
            ),
            compiler_params=pltpu.CompilerParams(
                dimension_semantics=("parallel", "arbitrary"),
                vmem_limit_bytes=vmem_limit),
            cost_estimate=cost,
        )(x, w_t, b, res, g, beta)

    return out.reshape(B, S, D)


# ----------------------------- references ----------------------------------

def _reference_f32(hidden_states, input_tensor, params, eps=1e-12):
    """Pure-JAX f32 reference mirroring the PyTorch forward (eval mode)."""
    y = hidden_states @ params["w"].T + params["b"]
    z = y + input_tensor
    mean = jnp.mean(z, axis=-1, keepdims=True)
    var = jnp.mean((z - mean) ** 2, axis=-1, keepdims=True)
    return (z - mean) / jnp.sqrt(var + eps) * params["gamma"] + params["beta"]


def _reference_matched(hidden_states, input_tensor, params, eps,
                       compute_dtype=_COMPUTE_DTYPE):
    """Reference with the same bf16-input / f32-accumulation datapath as the
    kernel (isolates tiling/fusion correctness from quantization error)."""
    B, S, I = hidden_states.shape
    D = input_tensor.shape[-1]
    w_t = params["w"].T.astype(compute_dtype)
    x = hidden_states.reshape(-1, I).astype(compute_dtype)
    y = jnp.dot(x, w_t, preferred_element_type=jnp.float32).reshape(B, S, D)
    z = y + params["b"].astype(jnp.float32) + input_tensor.astype(jnp.float32)
    mean = jnp.mean(z, axis=-1, keepdims=True)
    var = jnp.mean((z - mean) ** 2, axis=-1, keepdims=True)
    out = (z - mean) * jax.lax.rsqrt(var + eps) * params["gamma"] + params["beta"]
    return out.astype(hidden_states.dtype)


# ------------------------------- demo ---------------------------------------

if __name__ == "__main__":
    eps = 1e-12
    root_key = jax.random.PRNGKey(0)

    def make_case(key, B, S, D, I):
        k_x, k_res, k_w, k_b, k_g, k_beta = jax.random.split(key, 6)
        hidden_states = jax.random.normal(k_x, (B, S, I), jnp.float32)
        input_tensor = jax.random.normal(k_res, (B, S, D), jnp.float32)
        params = {
            "w": jax.random.normal(k_w, (D, I), jnp.float32) * 0.02,   # (out,in)
            "b": jax.random.normal(k_b, (D,), jnp.float32) * 0.01,
            "gamma": 1.0 + 0.1 * jax.random.normal(k_g, (D,), jnp.float32),
            "beta": 0.1 * jax.random.normal(k_beta, (D,), jnp.float32),
        }
        return hidden_states, input_tensor, params

    # (name, B, S, hidden D, intermediate I, weight_resident override)
    cases = [
        ("small module-scale", 2, 8, 32, 128, None),      # resident path
        ("lane-dense resident", 2, 64, 256, 512, None),   # resident, tiled rows
        ("k-streamed fallback", 2, 64, 256, 1024, False), # streamed-weight path
    ]

    keys = jax.random.split(root_key, len(cases))
    for (name, B, S, D, I, resident), key in zip(cases, keys):
        hidden_states, input_tensor, params = make_case(key, B, S, D, I)
        prepared = prepare_params(params)                  # one-time prep

        out = husky_qformer_output(hidden_states, input_tensor, prepared, eps,
                                   weight_resident=resident)
        jax.block_until_ready(out)
        assert out.shape == (B, S, D), name

        # Exact-ish check against a reference using the same bf16 datapath.
        ref_m = _reference_matched(hidden_states, input_tensor, params, eps)
        assert jnp.allclose(out, ref_m, atol=2e-4, rtol=2e-4), name

        # Semantic sanity check against the full-f32 PyTorch-style reference
        # (loose tolerance because of the bf16 matmul inputs).
        ref_f32 = _reference_f32(hidden_states, input_tensor, params, eps)
        assert jnp.allclose(out, ref_f32, atol=3e-2, rtol=3e-2), name

    print("KERNEL_OK")
</pallas_src>

<mosaic_0001>
module attributes {stable_mosaic.version = 11 : i64} {
  func.func @_fused_kernel_resident(%arg0: i32, %arg1: memref<16x128xbf16, #tpu.memory_space<vmem>>, %arg2: memref<128x32xbf16, #tpu.memory_space<vmem>>, %arg3: memref<1x32xf32, #tpu.memory_space<vmem>>, %arg4: memref<16x32xf32, #tpu.memory_space<vmem>>, %arg5: memref<1x32xf32, #tpu.memory_space<vmem>>, %arg6: memref<1x32xf32, #tpu.memory_space<vmem>>, %arg7: memref<16x32xf32, #tpu.memory_space<vmem>>) attributes {dimension_semantics = [#tpu.dimension_semantics<parallel>], iteration_bounds = array<i64: 1>, scalar_prefetch = 0 : i64, scratch_operands = 0 : i64, tpu.core_type = #tpu.core_type<tc>, window_params = [{transform_indices = @transform_0, window_bounds = array<i64: 16, 128>}, {pipeline_mode = #tpu.pipeline_mode<synchronous>, transform_indices = @transform_1, window_bounds = array<i64: 128, 32>}, {pipeline_mode = #tpu.pipeline_mode<synchronous>, transform_indices = @transform_2, window_bounds = array<i64: 1, 32>}, {transform_indices = @transform_3, window_bounds = array<i64: 16, 32>}, {pipeline_mode = #tpu.pipeline_mode<synchronous>, transform_indices = @transform_4, window_bounds = array<i64: 1, 32>}, {pipeline_mode = #tpu.pipeline_mode<synchronous>, transform_indices = @transform_5, window_bounds = array<i64: 1, 32>}, {transform_indices = @transform_6, window_bounds = array<i64: 16, 32>}]} {
    %c0 = arith.constant 0 : index
    %c0_0 = arith.constant 0 : index
    %0 = vector.load %arg1[%c0, %c0_0] : memref<16x128xbf16, #tpu.memory_space<vmem>>, vector<16x128xbf16>
    %c0_1 = arith.constant 0 : index
    %c0_2 = arith.constant 0 : index
    %1 = vector.load %arg2[%c0_1, %c0_2] : memref<128x32xbf16, #tpu.memory_space<vmem>>, vector<128x32xbf16>
    %cst = arith.constant dense<0.000000e+00> : vector<16x32xf32>
    %2 = tpu.matmul %0, %1, %cst {dimension_numbers = #tpu.dot_dimension_numbers<[1], [0], [0], [1], [0, 0, 1, 1], [], []>} : vector<16x128xbf16>, vector<128x32xbf16>, vector<16x32xf32> -> vector<16x32xf32>
    %c0_3 = arith.constant 0 : index
    %c0_4 = arith.constant 0 : index
    %3 = vector.load %arg3[%c0_3, %c0_4] : memref<1x32xf32, #tpu.memory_space<vmem>>, vector<1x32xf32>
    %4 = vector.broadcast %3 : vector<1x32xf32> to vector<16x32xf32>
    %5 = arith.addf %2, %4 : vector<16x32xf32>
    %c0_5 = arith.constant 0 : index
    %c0_6 = arith.constant 0 : index
    %6 = vector.load %arg4[%c0_5, %c0_6] : memref<16x32xf32, #tpu.memory_space<vmem>>, vector<16x32xf32>
    %7 = arith.addf %5, %6 : vector<16x32xf32>
    %c0_7 = arith.constant 0 : index
    %c0_8 = arith.constant 0 : index
    %8 = vector.load %arg5[%c0_7, %c0_8] : memref<1x32xf32, #tpu.memory_space<vmem>>, vector<1x32xf32>
    %c0_9 = arith.constant 0 : index
    %c0_10 = arith.constant 0 : index
    %9 = vector.load %arg6[%c0_9, %c0_10] : memref<1x32xf32, #tpu.memory_space<vmem>>, vector<1x32xf32>
    %cst_11 = arith.constant dense<0.000000e+00> : vector<16xf32>
    %10 = vector.multi_reduction <add>, %7, %cst_11 [1] : vector<16x32xf32> to vector<16xf32>
    %11 = vector.shape_cast %10 : vector<16xf32> to vector<16x1xf32>
    %12 = arith.mulf %7, %7 : vector<16x32xf32>
    %cst_12 = arith.constant dense<0.000000e+00> : vector<16xf32>
    %13 = vector.multi_reduction <add>, %12, %cst_12 [1] : vector<16x32xf32> to vector<16xf32>
    %14 = vector.shape_cast %13 : vector<16xf32> to vector<16x1xf32>
    %cst_13 = arith.constant 3.125000e-02 : f32
    %15 = vector.broadcast %cst_13 : f32 to vector<16x1xf32>
    %16 = arith.mulf %11, %15 : vector<16x1xf32>
    %cst_14 = arith.constant 3.125000e-02 : f32
    %17 = vector.broadcast %cst_14 : f32 to vector<16x1xf32>
    %18 = arith.mulf %14, %17 : vector<16x1xf32>
    %19 = arith.mulf %16, %16 : vector<16x1xf32>
    %20 = arith.subf %18, %19 : vector<16x1xf32>
    %cst_15 = arith.constant 0.000000e+00 : f32
    %21 = vector.broadcast %cst_15 : f32 to vector<16x1xf32>
    %22 = arith.maximumf %20, %21 : vector<16x1xf32>
    %cst_16 = arith.constant 9.99999996E-13 : f32
    %23 = vector.broadcast %cst_16 : f32 to vector<16x1xf32>
    %24 = arith.addf %22, %23 : vector<16x1xf32>
    %25 = math.rsqrt %24 : vector<16x1xf32>
    %26 = vector.broadcast %16 : vector<16x1xf32> to vector<16x32xf32>
    %27 = arith.subf %7, %26 : vector<16x32xf32>
    %28 = vector.broadcast %25 : vector<16x1xf32> to vector<16x32xf32>
    %29 = arith.mulf %27, %28 : vector<16x32xf32>
    %30 = vector.broadcast %8 : vector<1x32xf32> to vector<16x32xf32>
    %31 = arith.mulf %29, %30 : vector<16x32xf32>
    %32 = vector.broadcast %9 : vector<1x32xf32> to vector<16x32xf32>
    %33 = arith.addf %31, %32 : vector<16x32xf32>
    %c0_17 = arith.constant 0 : index
    %c0_18 = arith.constant 0 : index
    %34 = vector.load %arg7[%c0_17, %c0_18] : memref<16x32xf32, #tpu.memory_space<vmem>>, vector<16x32xf32>
    tpu.vector_store %arg7[%c0_17, %c0_18], %33 {strides = array<i32>} : memref<16x32xf32, #tpu.memory_space<vmem>>, vector<16x32xf32>,
    return
  }
  func.func @transform_0(%arg0: i32) -> (i32, i32) {
    %c0_i32 = arith.constant 0 : i32
    %c0_i32_0 = arith.constant 0 : i32
    return %arg0, %c0_i32 : i32, i32
  }
  func.func @transform_1(%arg0: i32) -> (i32, i32) {
    %c0_i32 = arith.constant 0 : i32
    %c0_i32_0 = arith.constant 0 : i32
    %c0_i32_1 = arith.constant 0 : i32
    return %c0_i32, %c0_i32_0 : i32, i32
  }
  func.func @transform_2(%arg0: i32) -> (i32, i32) {
    %c0_i32 = arith.constant 0 : i32
    %c0_i32_0 = arith.constant 0 : i32
    %c0_i32_1 = arith.constant 0 : i32
    return %c0_i32, %c0_i32_0 : i32, i32
  }
  func.func @transform_3(%arg0: i32) -> (i32, i32) {
    %c0_i32 = arith.constant 0 : i32
    %c0_i32_0 = arith.constant 0 : i32
    return %arg0, %c0_i32 : i32, i32
  }
  func.func @transform_4(%arg0: i32) -> (i32, i32) {
    %c0_i32 = arith.constant 0 : i32
    %c0_i32_0 = arith.constant 0 : i32
    %c0_i32_1 = arith.constant 0 : i32
    return %c0_i32, %c0_i32_0 : i32, i32
  }
  func.func @transform_5(%arg0: i32) -> (i32, i32) {
    %c0_i32 = arith.constant 0 : i32
    %c0_i32_0 = arith.constant 0 : i32
    %c0_i32_1 = arith.constant 0 : i32
    return %c0_i32, %c0_i32_0 : i32, i32
  }
  func.func @transform_6(%arg0: i32) -> (i32, i32) {
    %c0_i32 = arith.constant 0 : i32
    %c0_i32_0 = arith.constant 0 : i32
    return %arg0, %c0_i32 : i32, i32
  }
}

</mosaic_0001>

<llo_original>
// kernel: tpu_custom_call.1
$region0: #{tpu_custom_call.1}
  #allocation0 [shape = 'u32[]', space=smem, size = 0x4, offset = 0x4, fixed_abs, tag = 'smem constant byte address 0x4 - core index']
  #allocation1 [shape = 'u32[144,128]{1,0:T(1,128)}', space=vmem, size = 0x12000, scoped, tag = 'internal scratch']
  %s0 = inlined_call_operand.vmem [shape: bf16[16,128], index: 0, kind: input, shape index: {}]
  %s1 = inlined_call_operand.vmem [shape: bf16[128,32], index: 1, kind: input, shape index: {}]
  %s2 = inlined_call_operand.vmem [shape: f32[1,32], index: 2, kind: input, shape index: {}]
  %s3 = inlined_call_operand.vmem [shape: f32[16,32], index: 3, kind: input, shape index: {}]
  %s4 = inlined_call_operand.vmem [shape: f32[1,32], index: 4, kind: input, shape index: {}]
  %s5 = inlined_call_operand.vmem [shape: f32[1,32], index: 5, kind: input, shape index: {}]
  %s6 = inlined_call_operand.hbm [shape: f32[16,32], index: 6, kind: output, shape index: {}]
  %s7 = sld [smem:[#allocation0]]
  $region34: #{tpu_custom_call.1} parent=0
    _
  %s9 = ssub.s32 1, %s7
  %s10 = scalar_select 0, %s9, %s7
  $region1: #{tpu_custom_call.1} parent=0
    #allocation2 [shape = 'u8[8192]{0}', space=vmem, size = 0x2000, scoped, tag = 'output window, operand 0, single buffered']
    #allocation3 [shape = 's32[1]{0}', space=sflag, size = 0x4, scoped, tag = 'scoped memory for tpu_custom_call.1']
    %11 = vsyncpa [#allocation3], 0
    // Predicated region
    $region2: #{tpu_custom_call.1} parent=1 // pred_check
      _
    $region3: #{tpu_custom_call.1} parent=1 // pred_check_branch
      %13 = sbr.rel (0) target = $region5
    $region4: #{tpu_custom_call.1} parent=1 // pred_region
      _
    $region5: #{tpu_custom_call.1} parent=1 // pred_fallthru
      _
    // Predicated region
    $region6: #{tpu_custom_call.1} parent=1 // pred_check
      _
    $region7: #{tpu_custom_call.1} parent=1 // pred_check_branch
      %15 = sbr.rel (0) target = $region9
    $region8: #{tpu_custom_call.1} parent=1 // pred_region
      _
    $region9: #{tpu_custom_call.1} parent=1 // pred_fallthru
      _
    // Predicated region
    $region10: #{tpu_custom_call.1} parent=1 // pred_check
      _
    $region11: #{tpu_custom_call.1} parent=1 // pred_check_branch
      %17 = sbr.rel (0) target = $region13
    $region12: #{tpu_custom_call.1} parent=1 // pred_region
      _
    $region13: #{tpu_custom_call.1} parent=1 // pred_fallthru
      _
    // Predicated region
    $region14: #{tpu_custom_call.1} parent=1 // pred_check
      _
    $region15: #{tpu_custom_call.1} parent=1 // pred_check_branch
      %19 = sbr.rel (0) target = $region17
    $region16: #{tpu_custom_call.1} parent=1 // pred_region
      _
    $region17: #{tpu_custom_call.1} parent=1 // pred_fallthru
      _
    // Predicated region
    $region18: #{tpu_custom_call.1} parent=1 // pred_check
      _
    $region19: #{tpu_custom_call.1} parent=1 // pred_check_branch
      %21 = sbr.rel (0) target = $region21
    $region20: #{tpu_custom_call.1} parent=1 // pred_region
      _
    $region21: #{tpu_custom_call.1} parent=1 // pred_fallthru
      _
    // Predicated region
    $region22: #{tpu_custom_call.1} parent=1 // pred_check
      _
    $region23: #{tpu_custom_call.1} parent=1 // pred_check_branch
      %23 = sbr.rel (0) target = $region25
    $region24: #{tpu_custom_call.1} parent=1 // pred_region
      _
    $region25: #{tpu_custom_call.1} parent=1 // pred_fallthru
      _
    %v25 = vld [vmem:[%s0] sm:$0xf]
    %v26 = vld [vmem:[%s0 + $0x4] sm:$0xf]
    %v27 = vld [vmem:[%s1] sm:$0xf]
    %v28 = vld [vmem:[%s1 + $0x4] sm:$0xf]
    %v29 = vld [vmem:[%s1 + $0x8] sm:$0xf]
    %v30 = vld [vmem:[%s1 + $0xc] sm:$0xf]
    %v31 = vld [vmem:[%s1 + $0x10] sm:$0xf]
    %v32 = vld [vmem:[%s1 + $0x14] sm:$0xf]
    %v33 = vld [vmem:[%s1 + $0x18] sm:$0xf]
    %v34 = vld [vmem:[%s1 + $0x1c] sm:$0xf]
    %v35 = vld [vmem:[%s1 + $0x20] sm:$0xf]
    %v36 = vld [vmem:[%s1 + $0x24] sm:$0xf]
    %v37 = vld [vmem:[%s1 + $0x28] sm:$0xf]
    %v38 = vld [vmem:[%s1 + $0x2c] sm:$0xf]
    %v39 = vld [vmem:[%s1 + $0x30] sm:$0xf]
    %v40 = vld [vmem:[%s1 + $0x34] sm:$0xf]
    %v41 = vld [vmem:[%s1 + $0x38] sm:$0xf]
    %v42 = vld [vmem:[%s1 + $0x3c] sm:$0xf]
    %v43 = vld [vmem:[%s2] sm:$0x1]
    %v45 = vlaneseq
    %v46 = vshrl.u32 %v45, 7
    %v47 = vsub.s32 0, %v46
    %v48 = vrot.slane %v43, %v47
    %v52 = vunpack.c.l.b16 %v25
    %v53 = vunpack.c.l.b16 %v26
    %v54 = vpack.c.b16 %v53, %v52
    %v72 = vunpack.c.l.b16 %v27
    %v73 = vunpack.c.l.b16 %v28
    %v74 = vunpack.c.l.b16 %v29
    %v75 = vunpack.c.l.b16 %v30
    %v76 = vunpack.c.l.b16 %v31
    %v77 = vunpack.c.l.b16 %v32
    %v78 = vunpack.c.l.b16 %v33
    %v79 = vunpack.c.l.b16 %v34
    %v80 = vunpack.c.l.b16 %v35
    %v81 = vunpack.c.l.b16 %v36
    %v82 = vunpack.c.l.b16 %v37
    %v83 = vunpack.c.l.b16 %v38
    %v84 = vunpack.c.l.b16 %v39
    %v85 = vunpack.c.l.b16 %v40
    %v86 = vunpack.c.l.b16 %v41
    %v87 = vunpack.c.l.b16 %v42
    %v88 = vpack.c.b16 %v73, %v72
    %v89 = vpack.c.b16 %v75, %v74
    %v90 = vpack.c.b16 %v77, %v76
    %v91 = vpack.c.b16 %v79, %v78
    %v92 = vpack.c.b16 %v81, %v80
    %v93 = vpack.c.b16 %v83, %v82
    %v94 = vpack.c.b16 %v85, %v84
    %v95 = vpack.c.b16 %v87, %v86
    %104 = vmatprep.subr.bf16.mxu0 0
    %105 = vmatpush1.bf16.msra.mxu0 %v95
    %106 = vmatprep.subr.bf16.mxu0 0
    %107 = vmatpush1.bf16.msra.mxu0 %v94
    %108 = vmatprep.subr.bf16.mxu0 0
    %109 = vmatpush1.bf16.msra.mxu0 %v93
    %110 = vmatprep.subr.bf16.mxu0 0
    %111 = vmatpush1.bf16.msra.mxu0 %v92
    %112 = vmatprep.subr.bf16.mxu0 0
    %113 = vmatpush1.bf16.msra.mxu0 %v91
    %114 = vmatprep.subr.bf16.mxu0 0
    %115 = vmatpush1.bf16.msra.mxu0 %v90
    %116 = vmatprep.subr.bf16.mxu0 0
    %117 = vmatpush1.bf16.msra.mxu0 %v89
    %118 = vmatprep.subr.bf16.mxu0 0
    %119 = vmatpush1.bf16.msra.mxu0 %v88
    %120 = vmatprep.subr.bf16.mxu0 0
    %121 = vmatpush2.bf16.msra.mxu0 0
    %122 = vmatprep.subr.bf16.mxu0 0
    %123 = vmatpush2.bf16.msra.mxu0 0
    %124 = vmatprep.subr.bf16.mxu0 0
    %125 = vmatpush2.bf16.msra.mxu0 0
    %126 = vmatprep.subr.bf16.mxu0 0
    %127 = vmatpush2.bf16.msra.mxu0 0
    %128 = vmatprep.subr.bf16.mxu0 0
    %129 = vmatpush2.bf16.msra.mxu0 0
    %130 = vmatprep.subr.bf16.mxu0 0
    %131 = vmatpush2.bf16.msra.mxu0 0
    %132 = vmatprep.subr.bf16.mxu0 0
    %133 = vmatpush2.bf16.msra.mxu0 0
    %134 = vmatprep.subr.bf16.mxu0 0
    %135 = vmatpush2.bf16.msra.mxu0 0
    %136 = vmatprep.mubr.bf16.mxu0 0
    %137 = vmatmul.mubr.bf16.gmra.mxu0 %v54
    %v138 = vpop.f32.mrf.mxu0
    %v139 = vadd.f32 %v48, %v138
    %v140 = vpop.f32.mrf.mxu0
    %v141 = vpop.f32.mrf.mxu0
    %v142 = vadd.f32 %v48, %v141
    %v143 = vpop.f32.mrf.mxu0
    %144 = vdwg.mxu0
    %v145 = vld [vmem:[%s3] sm:$0xff]
    %v146 = vld [vmem:[%s3 + $0x8] sm:$0xff]
    %v147 = vadd.f32 %v139, %v145
    %v148 = vadd.f32 %v142, %v146
    %v149 = vld [vmem:[%s4] sm:$0x1]
    %v150 = vld [vmem:[%s5] sm:$0x1]
    %vm151 = vcmask 261120
    %v152 = vsel %vm151, %v147, 0.0
    %153 = vadd.xlane.f32.xlu0 %v152
    %v154 = vpop.xlane.xlu0 %153
    %v155 = vsel %vm151, %v148, 0.0
    %156 = vadd.xlane.f32.xlu0 %v155
    %v157 = vpop.xlane.xlu0 %156
    %v158 = vmul.f32 %v147, %v147
    %v159 = vmul.f32 %v148, %v148
    %v160 = vsel %vm151, %v158, 0.0
    %161 = vadd.xlane.f32.xlu0 %v160
    %v162 = vpop.xlane.xlu0 %161
    %v163 = vsel %vm151, %v159, 0.0
    %164 = vadd.xlane.f32.xlu0 %v163
    %v165 = vpop.xlane.xlu0 %164
    %v166 = vmul.f32 %v154, 0.03125
    %v167 = vmul.f32 %v157, 0.03125
    %v168 = vmul.f32 %v162, 0.03125
    %v169 = vmul.f32 %v165, 0.03125
    %v170 = vmul.f32 %v166, %v166
    %v171 = vmul.f32 %v167, %v167
    %v172 = vsub.f32 %v168, %v170
    %v173 = vsub.f32 %v169, %v171
    %v174 = vmax.f32 %v172, 0.0
    %v175 = vmax.f32 %v173, 0.0
    %v176 = vadd.f32 %v174, 1e-12
    %v177 = vadd.f32 %v175, 1e-12
    %v178 = vrsqrt.pop %v176
    %v179 = vrsqrt.pop %v177
    %v180 = vsub.f32 %v147, %v166
    %v181 = vsub.f32 %v148, %v167
    %v182 = vmul.f32 %v180, %v178
    %v183 = vmul.f32 %v181, %v179
    %v185 = vlaneseq
    %v186 = vshrl.u32 %v185, 7
    %v187 = vsub.s32 0, %v186
    %v188 = vrot.slane %v149, %v187
    %v190 = vmul.f32 %v182, %v188
    %v191 = vmul.f32 %v183, %v188
    %v193 = vlaneseq
    %v194 = vshrl.u32 %v193, 7
    %v195 = vsub.s32 0, %v194
    %v196 = vrot.slane %v150, %v195
    %v198 = vadd.f32 %v190, %v196
    %v199 = vadd.f32 %v191, %v196
    %200 = vst.msk [vmem:[#allocation2] sm:$0xff] %vm151, %v198
    %201 = vst.msk [vmem:[#allocation2 + $0x8] sm:$0xff] %vm151, %v199
    // Predicated region
    $region26: #{tpu_custom_call.1} parent=1 // pred_check
      _
    $region27: #{tpu_custom_call.1} parent=1 // pred_check_branch
      %203 = sbr.rel (0) target = $region29
    $region28: #{tpu_custom_call.1} parent=1 // pred_region
      %s205 = ssub.s32 256, 256
      %206 = vsyncadd [#allocation3], %s205
      %s207 = sshll.u32 [#allocation2], 4
      %s208 = int_to_ptr.vmem [resolvable:$true] %s207
      %213 = dma.vmem_to_hbm [thread:$0]  %s208, 256, %s6, [#allocation3], 128, 128, 8
    $region29: #{tpu_custom_call.1} parent=1 // pred_fallthru
      _
    // Predicated region
    $region30: #{tpu_custom_call.1} parent=1 // pred_check
      _
    $region31: #{tpu_custom_call.1} parent=1 // pred_check_branch
      %215 = sbr.rel (0) target = $region33
    $region32: #{tpu_custom_call.1} parent=1 // pred_region
      %216 = dma.done [#allocation3], 256
    $region33: #{tpu_custom_call.1} parent=1 // pred_fallthru
      _
    %217 = vsyncpa [#allocation3], 1

</llo_original>
